<compile_context>
chip_gen: v7x
topology: tpu7x:2x2x1
jax: 0.10.0
libtpu: 0.0.40
codegen_flags: <defaults>
</compile_context>

<pallas_src>
import math
import numpy as np
import jax
import jax.numpy as jnp
from jax.experimental import pallas as pl
from jax.experimental.pallas import tpu as pltpu

N_NODES = 10   # Flatten -> Linear(40, 24) with 4 features/node  =>  10 nodes
F_IN = 1
F_HID = 4
NF = N_NODES * F_HID   # 40
H1 = 24
H2 = 1
BATCH = 2


def gcn_kernel(x_ref, m1_ref, m2_ref, m3_ref, wl1_ref, consts_ref, o_ref):
    """Whole forward pass on resident VMEM operands (no grid).

    x_ref      : (B, N)        input node features (F_IN == 1, squeezed)
    m1_ref     : (N, N*F)      kron(A_hat^T, W1)   -- GCN layer 1 folded
    m2_ref     : (N*F, N*F)    kron(A_hat^T, W2)   -- GCN layer 2 folded
    m3_ref     : (N*F, N*F)    kron(A_hat^T, W3)   -- GCN layer 3 folded
    wl1_ref    : (N*F, 24)     first Linear weight (flatten is a no-op here)
    consts_ref : (6, N*F)      packed small constants:
                   row 0..2 : node-tiled biases b1, b2, b3   (width N*F)
                   row 3    : bl1 (first 24 lanes)
                   row 4    : wl2 column as a row (first 24 lanes)
                   row 5    : bl2 (lane 0)
    o_ref      : (B, 1)
    """
    f32 = jnp.float32
    x0 = x_ref[...]                              # (B, N)

    b1r = consts_ref[0:1, :]                     # (1, NF)
    b2r = consts_ref[1:2, :]
    b3r = consts_ref[2:3, :]
    bl1 = consts_ref[3:4, 0:H1]                  # (1, 24)
    wl2r = consts_ref[4:5, 0:H1]                 # (1, 24)
    bl2 = consts_ref[5:6, 0:1]                   # (1, 1)

    # GCN layer 1: relu( A_hat (X W1) + b1 )  ==  relu( X @ kron(A^T, W1) + b1 )
    g1 = jnp.maximum(
        jnp.dot(x0, m1_ref[...], preferred_element_type=f32) + b1r, 0.0)

    # GCN layer 2: relu( A_hat (G1 W2) + b2 )
    g2 = jnp.maximum(
        jnp.dot(g1, m2_ref[...], preferred_element_type=f32) + b2r, 0.0)

    # GCN layer 3 + pre-ReLU residual: relu( A_hat (G2 W3) + b3 + G1 )
    g3 = jnp.maximum(
        jnp.dot(g2, m3_ref[...], preferred_element_type=f32) + b3r + g1, 0.0)

    # Flatten is the identity in this layout.  Linear(40, 24) + ReLU.
    z = jnp.maximum(
        jnp.dot(g3, wl1_ref[...], preferred_element_type=f32) + bl1, 0.0)

    # Linear(24, 1) on the VPU: elementwise scale + lane reduction (no MXU).
    out = jnp.sum(z * wl2r, axis=-1, keepdims=True) + bl2               # (B, 1)

    o_ref[...] = out


def gcn_forward(adj, x, params):
    w1, b1, w2, b2, w3, b3, wl1, bl1, wl2, bl2 = params
    f32 = jnp.float32
    B, N, _ = x.shape

    adj_t = adj.astype(f32).T
    # Fold each GCN layer's weight into the shared (batch-independent)
    # normalized adjacency: M_l = kron(A_hat^T, W_l).
    #   (G @ M_l)[b, n*F+g] = sum_{m,f} G[b, m*F+f] * A_hat[n, m] * W_l[f, g]
    m1 = jnp.kron(adj_t, w1.astype(f32))          # (N,    N*F)
    m2 = jnp.kron(adj_t, w2.astype(f32))          # (N*F,  N*F)
    m3 = jnp.kron(adj_t, w3.astype(f32))          # (N*F,  N*F)

    x0 = x.reshape(B, N * F_IN).astype(f32)       # (B, N)   (F_IN == 1)

    # Pack every remaining small vector into one lane-padded VMEM constant.
    consts = jnp.zeros((6, NF), f32)
    consts = consts.at[0, :].set(jnp.tile(b1.astype(f32), N))
    consts = consts.at[1, :].set(jnp.tile(b2.astype(f32), N))
    consts = consts.at[2, :].set(jnp.tile(b3.astype(f32), N))
    consts = consts.at[3, :H1].set(bl1.astype(f32))
    consts = consts.at[4, :H1].set(wl2.astype(f32)[:, 0])
    consts = consts.at[5, 0].set(bl2.astype(f32)[0])

    args = (x0, m1, m2, m3, wl1.astype(f32), consts)

    vmem_spec = pl.BlockSpec(memory_space=pltpu.MemorySpace.VMEM)
    return pl.pallas_call(
        gcn_kernel,
        out_shape=jax.ShapeDtypeStruct((B, H2), jnp.float32),
        in_specs=[vmem_spec] * len(args),
        out_specs=vmem_spec,
    )(*args)


def ref_forward(adj, x, params):
    """Pure numpy (float64) reference for the same forward pass."""
    w1, b1, w2, b2, w3, b3, wl1, bl1, wl2, bl2 = [
        np.asarray(p, np.float64) for p in params]
    adj = np.asarray(adj, np.float64)
    x = np.asarray(x, np.float64)
    relu = lambda a: np.maximum(a, 0.0)
    h1 = relu(np.einsum('nm,bmf->bnf', adj, x @ w1) + b1)
    h2 = relu(np.einsum('nm,bmf->bnf', adj, h1 @ w2) + b2)
    h3 = relu(np.einsum('nm,bmf->bnf', adj, h2 @ w3) + b3 + h1)
    flat = h3.reshape(x.shape[0], -1)
    z = relu(flat @ wl1 + bl1)
    return z @ wl2 + bl2


def build_normalized_adj(edge_index, n):
    # TODO(synk): sparse scatter-based message passing is done as host glue
    # (dense A_hat); the per-edge gather itself is not expressed in the kernel.
    a = np.zeros((n, n), np.float32)
    a[edge_index[0], edge_index[1]] = 1.0
    a = a + np.eye(n, dtype=np.float32)        # add self-loops (GCNConv default)
    deg = a.sum(axis=1)
    dinv = 1.0 / np.sqrt(deg)
    return (a * dinv[:, None]) * dinv[None, :]


def init_params(key):
    def glorot(k, shape):
        lim = math.sqrt(6.0 / (shape[0] + shape[-1]))
        return jax.random.uniform(k, shape, jnp.float32, -lim, lim)
    ks = jax.random.split(key, 10)
    w1 = glorot(ks[0], (F_IN, F_HID));      b1 = jnp.zeros((F_HID,), jnp.float32)
    w2 = glorot(ks[1], (F_HID, F_HID));     b2 = jnp.zeros((F_HID,), jnp.float32)
    w3 = glorot(ks[2], (F_HID, F_HID));     b3 = jnp.zeros((F_HID,), jnp.float32)
    wl1 = glorot(ks[3], (NF, H1))
    bl1 = jax.random.uniform(ks[4], (H1,), jnp.float32, -0.1, 0.1)
    wl2 = glorot(ks[5], (H1, H2))
    bl2 = jax.random.uniform(ks[6], (H2,), jnp.float32, -0.1, 0.1)
    return (w1, b1, w2, b2, w3, b3, wl1, bl1, wl2, bl2)


if __name__ == "__main__":
    key = jax.random.PRNGKey(0)
    pkey, xkey = jax.random.split(key)

    # Ring graph over 10 nodes (both directions): edge_index of shape (2, 20).
    src = np.arange(N_NODES)
    dst = (src + 1) % N_NODES
    edge_index = np.stack([np.concatenate([src, dst]),
                           np.concatenate([dst, src])], axis=0)

    adj = jnp.asarray(build_normalized_adj(edge_index, N_NODES))
    x = jax.random.normal(xkey, (BATCH, N_NODES, F_IN), jnp.float32)
    params = init_params(pkey)

    out = gcn_forward(adj, x, params)
    out = jax.block_until_ready(out)

    ref = ref_forward(adj, x, params)
    assert out.shape == (BATCH, 1)
    assert np.allclose(np.asarray(out), ref, rtol=1e-3, atol=1e-3), (out, ref)
    print("KERNEL_OK")
</pallas_src>

<mosaic_0001>
module attributes {stable_mosaic.version = 11 : i64} {
  func.func @gcn_kernel(%arg0: memref<2x10xf32, #tpu.memory_space<vmem>>, %arg1: memref<10x40xf32, #tpu.memory_space<vmem>>, %arg2: memref<40x40xf32, #tpu.memory_space<vmem>>, %arg3: memref<40x40xf32, #tpu.memory_space<vmem>>, %arg4: memref<40x24xf32, #tpu.memory_space<vmem>>, %arg5: memref<6x40xf32, #tpu.memory_space<vmem>>, %arg6: memref<2x1xf32, #tpu.memory_space<vmem>>) attributes {dimension_semantics = [], scalar_prefetch = 0 : i64, scratch_operands = 0 : i64, tpu.core_type = #tpu.core_type<tc>} {
    %c0 = arith.constant 0 : index
    %c0_0 = arith.constant 0 : index
    %0 = vector.load %arg0[%c0, %c0_0] : memref<2x10xf32, #tpu.memory_space<vmem>>, vector<2x10xf32>
    %c0_1 = arith.constant 0 : index
    %c0_2 = arith.constant 0 : index
    %1 = vector.load %arg5[%c0_1, %c0_2] : memref<6x40xf32, #tpu.memory_space<vmem>>, vector<1x40xf32>
    %c1 = arith.constant 1 : index
    %c0_3 = arith.constant 0 : index
    %2 = vector.load %arg5[%c1, %c0_3] : memref<6x40xf32, #tpu.memory_space<vmem>>, vector<1x40xf32>
    %c2 = arith.constant 2 : index
    %c0_4 = arith.constant 0 : index
    %3 = vector.load %arg5[%c2, %c0_4] : memref<6x40xf32, #tpu.memory_space<vmem>>, vector<1x40xf32>
    %c3 = arith.constant 3 : index
    %c0_5 = arith.constant 0 : index
    %4 = vector.load %arg5[%c3, %c0_5] : memref<6x40xf32, #tpu.memory_space<vmem>>, vector<1x24xf32>
    %c4 = arith.constant 4 : index
    %c0_6 = arith.constant 0 : index
    %5 = vector.load %arg5[%c4, %c0_6] : memref<6x40xf32, #tpu.memory_space<vmem>>, vector<1x24xf32>
    %c5 = arith.constant 5 : index
    %c0_7 = arith.constant 0 : index
    %6 = vector.load %arg5[%c5, %c0_7] : memref<6x40xf32, #tpu.memory_space<vmem>>, vector<1x1xf32>
    %c0_8 = arith.constant 0 : index
    %c0_9 = arith.constant 0 : index
    %7 = vector.load %arg1[%c0_8, %c0_9] : memref<10x40xf32, #tpu.memory_space<vmem>>, vector<10x40xf32>
    %cst = arith.constant dense<0.000000e+00> : vector<2x40xf32>
    %8 = tpu.matmul %0, %7, %cst {dimension_numbers = #tpu.dot_dimension_numbers<[1], [0], [0], [1], [0, 0, 1, 1], [], []>} : vector<2x10xf32>, vector<10x40xf32>, vector<2x40xf32> -> vector<2x40xf32>
    %9 = vector.broadcast %1 : vector<1x40xf32> to vector<2x40xf32>
    %10 = arith.addf %8, %9 : vector<2x40xf32>
    %cst_10 = arith.constant 0.000000e+00 : f32
    %11 = vector.broadcast %cst_10 : f32 to vector<2x40xf32>
    %12 = arith.maximumf %10, %11 : vector<2x40xf32>
    %c0_11 = arith.constant 0 : index
    %c0_12 = arith.constant 0 : index
    %13 = vector.load %arg2[%c0_11, %c0_12] : memref<40x40xf32, #tpu.memory_space<vmem>>, vector<40x40xf32>
    %cst_13 = arith.constant dense<0.000000e+00> : vector<2x40xf32>
    %14 = tpu.matmul %12, %13, %cst_13 {dimension_numbers = #tpu.dot_dimension_numbers<[1], [0], [0], [1], [0, 0, 1, 1], [], []>} : vector<2x40xf32>, vector<40x40xf32>, vector<2x40xf32> -> vector<2x40xf32>
    %15 = vector.broadcast %2 : vector<1x40xf32> to vector<2x40xf32>
    %16 = arith.addf %14, %15 : vector<2x40xf32>
    %cst_14 = arith.constant 0.000000e+00 : f32
    %17 = vector.broadcast %cst_14 : f32 to vector<2x40xf32>
    %18 = arith.maximumf %16, %17 : vector<2x40xf32>
    %c0_15 = arith.constant 0 : index
    %c0_16 = arith.constant 0 : index
    %19 = vector.load %arg3[%c0_15, %c0_16] : memref<40x40xf32, #tpu.memory_space<vmem>>, vector<40x40xf32>
    %cst_17 = arith.constant dense<0.000000e+00> : vector<2x40xf32>
    %20 = tpu.matmul %18, %19, %cst_17 {dimension_numbers = #tpu.dot_dimension_numbers<[1], [0], [0], [1], [0, 0, 1, 1], [], []>} : vector<2x40xf32>, vector<40x40xf32>, vector<2x40xf32> -> vector<2x40xf32>
    %21 = vector.broadcast %3 : vector<1x40xf32> to vector<2x40xf32>
    %22 = arith.addf %20, %21 : vector<2x40xf32>
    %23 = arith.addf %22, %12 : vector<2x40xf32>
    %cst_18 = arith.constant 0.000000e+00 : f32
    %24 = vector.broadcast %cst_18 : f32 to vector<2x40xf32>
    %25 = arith.maximumf %23, %24 : vector<2x40xf32>
    %c0_19 = arith.constant 0 : index
    %c0_20 = arith.constant 0 : index
    %26 = vector.load %arg4[%c0_19, %c0_20] : memref<40x24xf32, #tpu.memory_space<vmem>>, vector<40x24xf32>
    %cst_21 = arith.constant dense<0.000000e+00> : vector<2x24xf32>
    %27 = tpu.matmul %25, %26, %cst_21 {dimension_numbers = #tpu.dot_dimension_numbers<[1], [0], [0], [1], [0, 0, 1, 1], [], []>} : vector<2x40xf32>, vector<40x24xf32>, vector<2x24xf32> -> vector<2x24xf32>
    %28 = vector.broadcast %4 : vector<1x24xf32> to vector<2x24xf32>
    %29 = arith.addf %27, %28 : vector<2x24xf32>
    %cst_22 = arith.constant 0.000000e+00 : f32
    %30 = vector.broadcast %cst_22 : f32 to vector<2x24xf32>
    %31 = arith.maximumf %29, %30 : vector<2x24xf32>
    %32 = vector.broadcast %5 : vector<1x24xf32> to vector<2x24xf32>
    %33 = arith.mulf %31, %32 : vector<2x24xf32>
    %cst_23 = arith.constant dense<0.000000e+00> : vector<2xf32>
    %34 = vector.multi_reduction <add>, %33, %cst_23 [1] : vector<2x24xf32> to vector<2xf32>
    %35 = vector.shape_cast %34 : vector<2xf32> to vector<2x1xf32>
    %36 = vector.broadcast %6 : vector<1x1xf32> to vector<2x1xf32>
    %37 = arith.addf %35, %36 : vector<2x1xf32>
    %c0_24 = arith.constant 0 : index
    %c0_25 = arith.constant 0 : index
    %38 = vector.load %arg6[%c0_24, %c0_25] : memref<2x1xf32, #tpu.memory_space<vmem>>, vector<2x1xf32>
    tpu.vector_store %arg6[%c0_24, %c0_25], %37 {strides = array<i32>} : memref<2x1xf32, #tpu.memory_space<vmem>>, vector<2x1xf32>,
    return
  }
}

</mosaic_0001>

<llo_original>
// kernel: tpu_custom_call.1
$region0: #{tpu_custom_call.1}
  #allocation0 [shape = 'u32[]', space=smem, size = 0x4, offset = 0x4, fixed_abs, tag = 'smem constant byte address 0x4 - core index']
  #allocation1 [shape = 'u32[144,128]{1,0:T(1,128)}', space=vmem, size = 0x12000, scoped, tag = 'internal scratch']
  %s0 = inlined_call_operand.vmem [shape: f32[2,10], index: 0, kind: input, shape index: {}]
  %s1 = inlined_call_operand.vmem [shape: f32[10,40], index: 1, kind: input, shape index: {}]
  %s2 = inlined_call_operand.vmem [shape: f32[40,40], index: 2, kind: input, shape index: {}]
  %s3 = inlined_call_operand.hbm [shape: f32[40,40], index: 3, kind: input, shape index: {}]
  %s4 = inlined_call_operand.vmem [shape: f32[40,24], index: 4, kind: input, shape index: {}]
  %s5 = inlined_call_operand.vmem [shape: f32[6,40], index: 5, kind: input, shape index: {}]
  %s6 = inlined_call_operand.vmem [shape: f32[2,1], index: 6, kind: output, shape index: {}]
  %s7 = sld [smem:[#allocation0]]
  $region38: #{tpu_custom_call.1} parent=0
    _
  %s9 = ssub.s32 1, %s7
  %s10 = scalar_select 0, %s9, %s7
  $region1: #{tpu_custom_call.1} parent=0
    #allocation2 [shape = 'u8[20480]{0}', space=vmem, size = 0x5000, scoped, tag = 'input window, operand 3, single buffered']
    #allocation3 [shape = 's32[1]{0}', space=sflag, size = 0x4, scoped, tag = 'scoped memory for tpu_custom_call.1']
    %11 = vsyncpa [#allocation3], 0
    // Predicated region
    $region2: #{tpu_custom_call.1} parent=1 // pred_check
      _
    $region3: #{tpu_custom_call.1} parent=1 // pred_check_branch
      %13 = sbr.rel (0) target = $region5
    $region4: #{tpu_custom_call.1} parent=1 // pred_region
      _
    $region5: #{tpu_custom_call.1} parent=1 // pred_fallthru
      _
    // Predicated region
    $region6: #{tpu_custom_call.1} parent=1 // pred_check
      _
    $region7: #{tpu_custom_call.1} parent=1 // pred_check_branch
      %15 = sbr.rel (0) target = $region9
    $region8: #{tpu_custom_call.1} parent=1 // pred_region
      _
    $region9: #{tpu_custom_call.1} parent=1 // pred_fallthru
      _
    // Predicated region
    $region10: #{tpu_custom_call.1} parent=1 // pred_check
      _
    $region11: #{tpu_custom_call.1} parent=1 // pred_check_branch
      %17 = sbr.rel (0) target = $region13
    $region12: #{tpu_custom_call.1} parent=1 // pred_region
      _
    $region13: #{tpu_custom_call.1} parent=1 // pred_fallthru
      _
    // Predicated region
    $region14: #{tpu_custom_call.1} parent=1 // pred_check
      _
    $region15: #{tpu_custom_call.1} parent=1 // pred_check_branch
      %19 = sbr.rel (0) target = $region17
    $region16: #{tpu_custom_call.1} parent=1 // pred_region
      %s21 = ssub.s32 640, 640
      %22 = vsyncadd [#allocation3], %s21
      %s23 = sshll.u32 [#allocation2], 4
      %s24 = int_to_ptr.vmem [resolvable:$true] %s23
      %29 = dma.hbm_to_vmem [thread:$0]  %s3, 640, %s24, [#allocation3], 128, 128, 8
    $region17: #{tpu_custom_call.1} parent=1 // pred_fallthru
      _
    // Predicated region
    $region18: #{tpu_custom_call.1} parent=1 // pred_check
      _
    $region19: #{tpu_custom_call.1} parent=1 // pred_check_branch
      %31 = sbr.rel (0) target = $region21
    $region20: #{tpu_custom_call.1} parent=1 // pred_region
      _
    $region21: #{tpu_custom_call.1} parent=1 // pred_fallthru
      _
    // Predicated region
    $region22: #{tpu_custom_call.1} parent=1 // pred_check
      _
    $region23: #{tpu_custom_call.1} parent=1 // pred_check_branch
      %33 = sbr.rel (0) target = $region25
    $region24: #{tpu_custom_call.1} parent=1 // pred_region
      _
    $region25: #{tpu_custom_call.1} parent=1 // pred_fallthru
      _
    // Predicated region
    $region26: #{tpu_custom_call.1} parent=1 // pred_check
      _
    $region27: #{tpu_custom_call.1} parent=1 // pred_check_branch
      %35 = sbr.rel (0) target = $region29
    $region28: #{tpu_custom_call.1} parent=1 // pred_region
      %36 = dma.done [#allocation3], 640
    $region29: #{tpu_custom_call.1} parent=1 // pred_fallthru
      _
    %v37 = vld [vmem:[%s0] sm:$0x3]
    %v38 = vld [vmem:[%s5] sm:$0x1]
    %v39 = vld [vmem:[%s5 + $0x1] sm:$0x1]
    %v40 = vld [vmem:[%s5 + $0x2] sm:$0x1]
    %v41 = vld [vmem:[%s5 + $0x3] sm:$0x1]
    %v42 = vld [vmem:[%s5 + $0x4] sm:$0x1]
    %v43 = vld [vmem:[%s5 + $0x5] sm:$0x1]
    %v44 = vld [vmem:[%s1] sm:$0xff]
    %v45 = vld [vmem:[%s1 + $0x8] sm:$0x3]
    %v46 = vlaneseq
    %v47 = vshrl.u32 %v46, 7
    %v48 = vsub.s32 0, %v47
    %v49 = vrot.slane %v38, %v48
    %vm50 = vcmask 80896
    %v52 = vsel %vm50, %v37, 0
    %vm54 = vcmask 1041408
    %v56 = vsel %vm54, %v45, 0
    %58 = vmatprep.subr.mxu0 0.0
    %59 = vmatpush1.msra.mxu0 %v44
    %60 = vmatprep.subr.mxu0 0.0
    %61 = vmatpush1.msra.mxu0 %v56
    %62 = vmatprep.subr.mxu0 0.0
    %63 = vmatpush1.msra.mxu0 0.0
    %64 = vmatprep.subr.mxu0 0.0
    %65 = vmatpush1.msra.mxu0 0.0
    %66 = vmatprep.subr.mxu0 0.0
    %67 = vmatpush1.msra.mxu0 0.0
    %68 = vmatprep.subr.mxu0 0.0
    %69 = vmatpush1.msra.mxu0 0.0
    %70 = vmatprep.subr.mxu0 0.0
    %71 = vmatpush1.msra.mxu0 0.0
    %72 = vmatprep.subr.mxu0 0.0
    %73 = vmatpush1.msra.mxu0 0.0
    %74 = vmatprep.subr.mxu0 0.0
    %75 = vmatpush1.msra.mxu0 0.0
    %76 = vmatprep.subr.mxu0 0.0
    %77 = vmatpush1.msra.mxu0 0.0
    %78 = vmatprep.subr.mxu0 0.0
    %79 = vmatpush1.msra.mxu0 0.0
    %80 = vmatprep.subr.mxu0 0.0
    %81 = vmatpush1.msra.mxu0 0.0
    %82 = vmatprep.subr.mxu0 0.0
    %83 = vmatpush1.msra.mxu0 0.0
    %84 = vmatprep.subr.mxu0 0.0
    %85 = vmatpush1.msra.mxu0 0.0
    %86 = vmatprep.subr.mxu0 0.0
    %87 = vmatpush1.msra.mxu0 0.0
    %88 = vmatprep.subr.mxu0 0.0
    %89 = vmatpush1.msra.mxu0 0.0
    %90 = vmatprep.subr.mxu0 0.0
    %91 = vmatpush1.msra.mxu0 0.0
    %92 = vmatprep.subr.mxu0 0.0
    %93 = vmatpush1.msra.mxu0 0.0
    %94 = vmatprep.subr.mxu0 0.0
    %95 = vmatpush1.msra.mxu0 0.0
    %96 = vmatprep.subr.mxu0 0.0
    %97 = vmatpush1.msra.mxu0 0.0
    %98 = vmatprep.subr.mxu0 0.0
    %99 = vmatpush1.msra.mxu0 0.0
    %100 = vmatprep.subr.mxu0 0.0
    %101 = vmatpush1.msra.mxu0 0.0
    %102 = vmatprep.subr.mxu0 0.0
    %103 = vmatpush1.msra.mxu0 0.0
    %104 = vmatprep.subr.mxu0 0.0
    %105 = vmatpush1.msra.mxu0 0.0
    %106 = vmatprep.subr.mxu0 0.0
    %107 = vmatpush1.msra.mxu0 0.0
    %108 = vmatprep.subr.mxu0 0.0
    %109 = vmatpush1.msra.mxu0 0.0
    %110 = vmatprep.subr.mxu0 0.0
    %111 = vmatpush1.msra.mxu0 0.0
    %112 = vmatprep.subr.mxu0 0.0
    %113 = vmatpush1.msra.mxu0 0.0
    %114 = vmatprep.subr.mxu0 0.0
    %115 = vmatpush1.msra.mxu0 0.0
    %116 = vmatprep.subr.mxu0 0.0
    %117 = vmatpush1.msra.mxu0 0.0
    %118 = vmatprep.subr.mxu0 0.0
    %119 = vmatpush1.msra.mxu0 0.0
    %120 = vmatprep.subr.mxu0 0.0
    %121 = vmatpush1.msra.mxu0 0.0
    %122 = vmatprep.mubr.f32.mxu0 0.0
    %123 = vmatmul.mubr.f32.gmra.mrb[0].mxu0 %v52
    %v124 = vpop.f32.mrb[0].mxu0
    %v125 = vadd.f32 %v49, %v124
    %v126 = vpop.f32.mrb[0].mxu0
    %127 = vdwg.mxu0
    %v128 = vmax.f32 %v125, 0.0
    %v129 = vld [vmem:[%s2] sm:$0xff]
    %v130 = vld [vmem:[%s2 + $0x8] sm:$0xff]
    %v131 = vld [vmem:[%s2 + $0x10] sm:$0xff]
    %v132 = vld [vmem:[%s2 + $0x18] sm:$0xff]
    %v133 = vld [vmem:[%s2 + $0x20] sm:$0xff]
    %v134 = vlaneseq
    %v135 = vshrl.u32 %v134, 7
    %v136 = vsub.s32 0, %v135
    %v137 = vrot.slane %v39, %v136
    %vm138 = vcmask 326656
    %v140 = vsel %vm138, %v128, 0
    %142 = vmatprep.subr.mxu0 0.0
    %143 = vmatpush1.msra.mxu0 %v129
    %144 = vmatprep.subr.mxu0 0.0
    %145 = vmatpush1.msra.mxu0 %v130
    %146 = vmatprep.subr.mxu0 0.0
    %147 = vmatpush1.msra.mxu0 %v131
    %148 = vmatprep.subr.mxu0 0.0
    %149 = vmatpush1.msra.mxu0 %v132
    %150 = vmatprep.subr.mxu0 0.0
    %151 = vmatpush1.msra.mxu0 %v133
    %152 = vmatprep.subr.mxu0 0.0
    %153 = vmatpush1.msra.mxu0 0.0
    %154 = vmatprep.subr.mxu0 0.0
    %155 = vmatpush1.msra.mxu0 0.0
    %156 = vmatprep.subr.mxu0 0.0
    %157 = vmatpush1.msra.mxu0 0.0
    %158 = vmatprep.subr.mxu0 0.0
    %159 = vmatpush1.msra.mxu0 0.0
    %160 = vmatprep.subr.mxu0 0.0
    %161 = vmatpush1.msra.mxu0 0.0
    %162 = vmatprep.subr.mxu0 0.0
    %163 = vmatpush1.msra.mxu0 0.0
    %164 = vmatprep.subr.mxu0 0.0
    %165 = vmatpush1.msra.mxu0 0.0
    %166 = vmatprep.subr.mxu0 0.0
    %167 = vmatpush1.msra.mxu0 0.0
    %168 = vmatprep.subr.mxu0 0.0
    %169 = vmatpush1.msra.mxu0 0.0
    %170 = vmatprep.subr.mxu0 0.0
    %171 = vmatpush1.msra.mxu0 0.0
    %172 = vmatprep.subr.mxu0 0.0
    %173 = vmatpush1.msra.mxu0 0.0
    %174 = vmatprep.subr.mxu0 0.0
    %175 = vmatpush1.msra.mxu0 0.0
    %176 = vmatprep.subr.mxu0 0.0
    %177 = vmatpush1.msra.mxu0 0.0
    %178 = vmatprep.subr.mxu0 0.0
    %179 = vmatpush1.msra.mxu0 0.0
    %180 = vmatprep.subr.mxu0 0.0
    %181 = vmatpush1.msra.mxu0 0.0
    %182 = vmatprep.subr.mxu0 0.0
    %183 = vmatpush1.msra.mxu0 0.0
    %184 = vmatprep.subr.mxu0 0.0
    %185 = vmatpush1.msra.mxu0 0.0
    %186 = vmatprep.subr.mxu0 0.0
    %187 = vmatpush1.msra.mxu0 0.0
    %188 = vmatprep.subr.mxu0 0.0
    %189 = vmatpush1.msra.mxu0 0.0
    %190 = vmatprep.subr.mxu0 0.0
    %191 = vmatpush1.msra.mxu0 0.0
    %192 = vmatprep.subr.mxu0 0.0
    %193 = vmatpush1.msra.mxu0 0.0
    %194 = vmatprep.subr.mxu0 0.0
    %195 = vmatpush1.msra.mxu0 0.0
    %196 = vmatprep.subr.mxu0 0.0
    %197 = vmatpush1.msra.mxu0 0.0
    %198 = vmatprep.subr.mxu0 0.0
    %199 = vmatpush1.msra.mxu0 0.0
    %200 = vmatprep.subr.mxu0 0.0
    %201 = vmatpush1.msra.mxu0 0.0
    %202 = vmatprep.subr.mxu0 0.0
    %203 = vmatpush1.msra.mxu0 0.0
    %204 = vmatprep.subr.mxu0 0.0
    %205 = vmatpush1.msra.mxu0 0.0
    %206 = vmatprep.mubr.f32.mxu0 0.0
    %207 = vmatmul.mubr.f32.gmra.mrb[0].mxu0 %v140
    %v208 = vpop.f32.mrb[0].mxu0
    %v209 = vadd.f32 %v137, %v208
    %v210 = vpop.f32.mrb[0].mxu0
    %211 = vdwg.mxu0
    %v212 = vmax.f32 %v209, 0.0
    %v213 = vld [vmem:[#allocation2] sm:$0xff]
    %v214 = vld [vmem:[#allocation2 + $0x8] sm:$0xff]
    %v215 = vld [vmem:[#allocation2 + $0x10] sm:$0xff]
    %v216 = vld [vmem:[#allocation2 + $0x18] sm:$0xff]
    %v217 = vld [vmem:[#allocation2 + $0x20] sm:$0xff]
    %v218 = vlaneseq
    %v219 = vshrl.u32 %v218, 7
    %v220 = vsub.s32 0, %v219
    %v221 = vrot.slane %v40, %v220
    %v223 = vsel %vm138, %v212, 0
    %225 = vmatprep.subr.mxu0 0.0
    %226 = vmatpush1.msra.mxu0 %v213
    %227 = vmatprep.subr.mxu0 0.0
    %228 = vmatpush1.msra.mxu0 %v214
    %229 = vmatprep.subr.mxu0 0.0
    %230 = vmatpush1.msra.mxu0 %v215
    %231 = vmatprep.subr.mxu0 0.0
    %232 = vmatpush1.msra.mxu0 %v216
    %233 = vmatprep.subr.mxu0 0.0
    %234 = vmatpush1.msra.mxu0 %v217
    %235 = vmatprep.subr.mxu0 0.0
    %236 = vmatpush1.msra.mxu0 0.0
    %237 = vmatprep.subr.mxu0 0.0
    %238 = vmatpush1.msra.mxu0 0.0
    %239 = vmatprep.subr.mxu0 0.0
    %240 = vmatpush1.msra.mxu0 0.0
    %241 = vmatprep.subr.mxu0 0.0
    %242 = vmatpush1.msra.mxu0 0.0
    %243 = vmatprep.subr.mxu0 0.0
    %244 = vmatpush1.msra.mxu0 0.0
    %245 = vmatprep.subr.mxu0 0.0
    %246 = vmatpush1.msra.mxu0 0.0
    %247 = vmatprep.subr.mxu0 0.0
    %248 = vmatpush1.msra.mxu0 0.0
    %249 = vmatprep.subr.mxu0 0.0
    %250 = vmatpush1.msra.mxu0 0.0
    %251 = vmatprep.subr.mxu0 0.0
    %252 = vmatpush1.msra.mxu0 0.0
    %253 = vmatprep.subr.mxu0 0.0
    %254 = vmatpush1.msra.mxu0 0.0
    %255 = vmatprep.subr.mxu0 0.0
    %256 = vmatpush1.msra.mxu0 0.0
    %257 = vmatprep.subr.mxu0 0.0
    %258 = vmatpush1.msra.mxu0 0.0
    %259 = vmatprep.subr.mxu0 0.0
    %260 = vmatpush1.msra.mxu0 0.0
    %261 = vmatprep.subr.mxu0 0.0
    %262 = vmatpush1.msra.mxu0 0.0
    %263 = vmatprep.subr.mxu0 0.0
    %264 = vmatpush1.msra.mxu0 0.0
    %265 = vmatprep.subr.mxu0 0.0
    %266 = vmatpush1.msra.mxu0 0.0
    %267 = vmatprep.subr.mxu0 0.0
    %268 = vmatpush1.msra.mxu0 0.0
    %269 = vmatprep.subr.mxu0 0.0
    %270 = vmatpush1.msra.mxu0 0.0
    %271 = vmatprep.subr.mxu0 0.0
    %272 = vmatpush1.msra.mxu0 0.0
    %273 = vmatprep.subr.mxu0 0.0
    %274 = vmatpush1.msra.mxu0 0.0
    %275 = vmatprep.subr.mxu0 0.0
    %276 = vmatpush1.msra.mxu0 0.0
    %277 = vmatprep.subr.mxu0 0.0
    %278 = vmatpush1.msra.mxu0 0.0
    %279 = vmatprep.subr.mxu0 0.0
    %280 = vmatpush1.msra.mxu0 0.0
    %281 = vmatprep.subr.mxu0 0.0
    %282 = vmatpush1.msra.mxu0 0.0
    %283 = vmatprep.subr.mxu0 0.0
    %284 = vmatpush1.msra.mxu0 0.0
    %285 = vmatprep.subr.mxu0 0.0
    %286 = vmatpush1.msra.mxu0 0.0
    %287 = vmatprep.subr.mxu0 0.0
    %288 = vmatpush1.msra.mxu0 0.0
    %289 = vmatprep.mubr.f32.mxu0 0.0
    %290 = vmatmul.mubr.f32.gmra.mrb[0].mxu0 %v223
    %v291 = vpop.f32.mrb[0].mxu0
    %v292 = vadd.f32 %v221, %v291
    %v293 = vpop.f32.mrb[0].mxu0
    %294 = vdwg.mxu0
    %v295 = vadd.f32 %v292, %v128
    %v296 = vmax.f32 %v295, 0.0
    %v297 = vld [vmem:[%s4] sm:$0xff]
    %v298 = vld [vmem:[%s4 + $0x8] sm:$0xff]
    %v299 = vld [vmem:[%s4 + $0x10] sm:$0xff]
    %v300 = vld [vmem:[%s4 + $0x18] sm:$0xff]
    %v301 = vld [vmem:[%s4 + $0x20] sm:$0xff]
    %v302 = vlaneseq
    %v303 = vshrl.u32 %v302, 7
    %v304 = vsub.s32 0, %v303
    %v305 = vrot.slane %v41, %v304
    %v307 = vsel %vm138, %v296, 0
    %309 = vmatprep.subr.mxu0 0.0
    %310 = vmatpush1.msra.mxu0 %v297
    %311 = vmatprep.subr.mxu0 0.0
    %312 = vmatpush1.msra.mxu0 %v298
    %313 = vmatprep.subr.mxu0 0.0
    %314 = vmatpush1.msra.mxu0 %v299
    %315 = vmatprep.subr.mxu0 0.0
    %316 = vmatpush1.msra.mxu0 %v300
    %317 = vmatprep.subr.mxu0 0.0
    %318 = vmatpush1.msra.mxu0 %v301
    %319 = vmatprep.subr.mxu0 0.0
    %320 = vmatpush1.msra.mxu0 0.0
    %321 = vmatprep.subr.mxu0 0.0
    %322 = vmatpush1.msra.mxu0 0.0
    %323 = vmatprep.subr.mxu0 0.0
    %324 = vmatpush1.msra.mxu0 0.0
    %325 = vmatprep.subr.mxu0 0.0
    %326 = vmatpush1.msra.mxu0 0.0
    %327 = vmatprep.subr.mxu0 0.0
    %328 = vmatpush1.msra.mxu0 0.0
    %329 = vmatprep.subr.mxu0 0.0
    %330 = vmatpush1.msra.mxu0 0.0
    %331 = vmatprep.subr.mxu0 0.0
    %332 = vmatpush1.msra.mxu0 0.0
    %333 = vmatprep.subr.mxu0 0.0
    %334 = vmatpush1.msra.mxu0 0.0
    %335 = vmatprep.subr.mxu0 0.0
    %336 = vmatpush1.msra.mxu0 0.0
    %337 = vmatprep.subr.mxu0 0.0
    %338 = vmatpush1.msra.mxu0 0.0
    %339 = vmatprep.subr.mxu0 0.0
    %340 = vmatpush1.msra.mxu0 0.0
    %341 = vmatprep.subr.mxu0 0.0
    %342 = vmatpush1.msra.mxu0 0.0
    %343 = vmatprep.subr.mxu0 0.0
    %344 = vmatpush1.msra.mxu0 0.0
    %345 = vmatprep.subr.mxu0 0.0
    %346 = vmatpush1.msra.mxu0 0.0
    %347 = vmatprep.subr.mxu0 0.0
    %348 = vmatpush1.msra.mxu0 0.0
    %349 = vmatprep.subr.mxu0 0.0
    %350 = vmatpush1.msra.mxu0 0.0
    %351 = vmatprep.subr.mxu0 0.0
    %352 = vmatpush1.msra.mxu0 0.0
    %353 = vmatprep.subr.mxu0 0.0
    %354 = vmatpush1.msra.mxu0 0.0
    %355 = vmatprep.subr.mxu0 0.0
    %356 = vmatpush1.msra.mxu0 0.0
    %357 = vmatprep.subr.mxu0 0.0
    %358 = vmatpush1.msra.mxu0 0.0
    %359 = vmatprep.subr.mxu0 0.0
    %360 = vmatpush1.msra.mxu0 0.0
    %361 = vmatprep.subr.mxu0 0.0
    %362 = vmatpush1.msra.mxu0 0.0
    %363 = vmatprep.subr.mxu0 0.0
    %364 = vmatpush1.msra.mxu0 0.0
    %365 = vmatprep.subr.mxu0 0.0
    %366 = vmatpush1.msra.mxu0 0.0
    %367 = vmatprep.subr.mxu0 0.0
    %368 = vmatpush1.msra.mxu0 0.0
    %369 = vmatprep.subr.mxu0 0.0
    %370 = vmatpush1.msra.mxu0 0.0
    %371 = vmatprep.subr.mxu0 0.0
    %372 = vmatpush1.msra.mxu0 0.0
    %373 = vmatprep.mubr.f32.mxu0 0.0
    %374 = vmatmul.mubr.f32.gmra.mrb[0].mxu0 %v307
    %v375 = vpop.f32.mrb[0].mxu0
    %v376 = vadd.f32 %v305, %v375
    %v377 = vpop.f32.mrb[0].mxu0
    %378 = vdwg.mxu0
    %v379 = vmax.f32 %v376, 0.0
    %v380 = vlaneseq
    %v381 = vshrl.u32 %v380, 7
    %v382 = vsub.s32 0, %v381
    %v383 = vrot.slane %v42, %v382
    %v384 = vmul.f32 %v379, %v383
    %vm385 = vcmask 189440
    %v386 = vsel %vm385, %v384, 0.0
    %387 = vadd.xlane.f32.xlu0 %v386
    %v388 = vpop.xlane.xlu0 %387
    %v389 = vlaneseq
    %v390 = vshrl.u32 %v389, 7
    %v391 = vsub.s32 0, %v390
    %v392 = vrot.slane %v43, %v391
    %v393 = vadd.f32 %v388, %v392
    %vm394 = vcmask 1024
    %395 = vst.msk [vmem:[%s6] sm:$0x3] %vm394, %v393
    // Predicated region
    $region30: #{tpu_custom_call.1} parent=1 // pred_check
      _
    $region31: #{tpu_custom_call.1} parent=1 // pred_check_branch
      %397 = sbr.rel (0) target = $region33
    $region32: #{tpu_custom_call.1} parent=1 // pred_region
      _
    $region33: #{tpu_custom_call.1} parent=1 // pred_fallthru
      _
    // Predicated region
    $region34: #{tpu_custom_call.1} parent=1 // pred_check
      _
    $region35: #{tpu_custom_call.1} parent=1 // pred_check_branch
      %399 = sbr.rel (0) target = $region37
    $region36: #{tpu_custom_call.1} parent=1 // pred_region
      _
    $region37: #{tpu_custom_call.1} parent=1 // pred_fallthru
      _
    %400 = vsyncpa [#allocation3], 1

</llo_original>
